<compile_context>
chip_gen: v6e
topology: v6e:2x2x1
jax: 0.10.0
libtpu: 0.0.40
codegen_flags: <defaults>
</compile_context>

<pallas_src>
import jax
import jax.numpy as jnp
from jax.experimental import pallas as pl
from jax.experimental.pallas import tpu as pltpu


def _pick_block_rows(n_rows, c, hw_p, itemsize=4, budget_bytes=2 << 20):
    """Rows per grid step.

    Constraints: multiple of C (the 1x1 conv needs whole images in a block),
    legal TPU block (rows % 8 == 0 or rows == full extent), divides n_rows.
    Preference: within the VMEM budget, fill >=8 sublanes, and keep >=2 grid
    steps when possible (megacore work for v7x).
    """
    cands = []
    for r in range(c, n_rows + 1, c):
        if n_rows % r:
            continue
        if (r % 8) and r != n_rows:
            continue  # (8,128) sublane constraint on the block shape
        cands.append(r)
    good = [r for r in cands if r * hw_p * itemsize <= budget_bytes]
    pool = good or cands
    multi = [r for r in pool if (n_rows // r) >= 2]   # keep >=2 grid steps if we can
    return max(multi) if multi else max(pool)


def edge_enhancer(x_nchw, w_conv, bn_gamma, bn_beta, bn_mean, bn_var, eps=1e-5):
    N, C, H, W = x_nchw.shape
    HW = H * W
    HWp = ((HW + 127) // 128) * 128            # lane-dense padding (unmasked vst)
    n_rows = N * C

    # NCHW-native: (N, C, H, W) -> (N*C, HW) is a free reshape; pad spatial tail with 0.
    x2d = x_nchw.reshape(n_rows, HW)
    if HWp != HW:
        x2d = jnp.pad(x2d, ((0, 0), (0, HWp - HW)))

    # Fold BatchNorm (inference) into the 1x1 conv: per-output-channel scale goes into
    # the weight, the shift stays as a per-row bias added in the kernel.
    inv_std = 1.0 / jnp.sqrt(bn_var.astype(jnp.float32) + jnp.float32(eps))
    scale = bn_gamma.astype(jnp.float32) * inv_std                      # (C,)
    w_scaled = w_conv.astype(jnp.float32) * scale[:, None]              # (Cout, Cin)
    shift = (bn_beta.astype(jnp.float32)
             - bn_mean.astype(jnp.float32) * scale).reshape(C, 1)       # (C, 1)

    # Block geometry: R rows = Bn images * C channels per grid step.
    R = _pick_block_rows(n_rows, C, HWp)
    Bn = R // C
    grid = (n_rows // R,)

    # Block-diagonal weight so one MXU matmul mixes channels for every image in the block.
    w_block = jnp.kron(jnp.eye(Bn, dtype=jnp.float32), w_scaled)        # (R, R)
    shift_blk = jnp.tile(shift, (Bn, 1))                                # (R, 1)

    # Boundary masks for the flattened-HW stencil, computed ONCE here (hoisted out of
    # the kernel body).  Out-of-image (padded) lanes never feed real lanes, so their
    # mask values are don't-care.
    lane = jnp.arange(HWp, dtype=jnp.int32)
    col = lane % W
    masks = jnp.stack([
        lane >= W,               # has_up    (h >= 1)
        lane < (HW - W),         # has_down  (h <= H-2)
        col > 0,                 # has_left  (w >= 1)
        col < (W - 1),           # has_right (w <= W-2)
    ]).astype(jnp.float32)                                              # (4, HWp)

    def kernel(x_ref, m_ref, w_ref, shift_ref, o_ref):
        x2 = x_ref[...].astype(jnp.float32)                             # (R, HWp)

        m_up = m_ref[0:1, :]
        m_down = m_ref[1:2, :]
        m_left = m_ref[2:3, :]
        m_right = m_ref[3:4, :]

        # Vertical 3-tap sum: x[h-1] + x[h] + x[h+1] (zeros outside the image).
        up = pltpu.roll(x2, W, axis=1) * m_up
        down = pltpu.roll(x2, HWp - W, axis=1) * m_down
        vsum = x2 + up + down

        # Horizontal 3-tap sum on vsum: v[w-1] + v[w] + v[w+1] (zeros outside the row).
        left = pltpu.roll(vsum, 1, axis=1) * m_left
        right = pltpu.roll(vsum, HWp - 1, axis=1) * m_right

        # AvgPool2d(3, stride=1, pad=1), count_include_pad=True -> divide by 9.
        pooled = (vsum + left + right) * jnp.float32(1.0 / 9.0)
        edge = x2 - pooled                                              # (R, HWp)

        # 1x1 conv (with folded BN scale) for all Bn images at once on the MXU.
        conv = jnp.dot(w_ref[...], edge, preferred_element_type=jnp.float32)
        y = conv + shift_ref[...]                                       # BN shift

        # Sigmoid via EUP tanh: 0.5*(1 + tanh(y/2)).  No f32 divide on the VALU path.
        gate = 0.5 * jnp.tanh(0.5 * y) + 0.5

        o_ref[...] = (x2 + gate).astype(o_ref.dtype)                    # residual

    itemsize = jnp.dtype(x2d.dtype).itemsize
    cost = pl.CostEstimate(
        flops=int(n_rows * HWp * (2 * R + 16)),
        transcendentals=int(n_rows * HWp),
        bytes_accessed=int(2 * n_rows * HWp * itemsize
                           + (R * R + R + 4 * HWp) * 4),
    )

    out2d = pl.pallas_call(
        kernel,
        out_shape=jax.ShapeDtypeStruct((n_rows, HWp), x2d.dtype),
        grid_spec=pltpu.PrefetchScalarGridSpec(
            num_scalar_prefetch=0,
            grid=grid,
            in_specs=[
                pl.BlockSpec((R, HWp), lambda g: (g, 0)),    # Bn images (all channels)
                pl.BlockSpec((4, HWp), lambda g: (0, 0)),    # precomputed stencil masks
                pl.BlockSpec((R, R), lambda g: (0, 0)),      # block-diag conv*BN-scale
                pl.BlockSpec((R, 1), lambda g: (0, 0)),      # BN shift per row
            ],
            out_specs=pl.BlockSpec((R, HWp), lambda g: (g, 0)),
        ),
        compiler_params=pltpu.CompilerParams(
            dimension_semantics=("parallel",),
            vmem_limit_bytes=32 * 1024 * 1024,   # fits v7x (64 MiB phys) with headroom
        ),
        cost_estimate=cost,
    )(x2d, masks, w_block, shift_blk)

    return out2d[:, :HW].reshape(N, C, H, W)


def reference(x, w_conv, gamma, beta, mean, var, eps=1e-5):
    """Pure-JAX NCHW reference matching PyTorch semantics (for verification)."""
    xp = jnp.pad(x, ((0, 0), (0, 0), (1, 1), (1, 1)))
    pooled = sum(xp[:, :, dh:dh + x.shape[2], dw:dw + x.shape[3]]
                 for dh in range(3) for dw in range(3)) / 9.0
    edge = x - pooled
    conv = jnp.einsum('oi,nihw->nohw', w_conv, edge)
    y = ((conv - mean[None, :, None, None]) / jnp.sqrt(var + eps)[None, :, None, None]
         * gamma[None, :, None, None] + beta[None, :, None, None])
    return x + 1.0 / (1.0 + jnp.exp(-y))


if __name__ == "__main__":
    key = jax.random.PRNGKey(0)
    kx, kw, kg, kb, km, kv = jax.random.split(key, 6)
    N, C, H, W = 2, 4, 16, 16

    x = jax.random.normal(kx, (N, C, H, W), jnp.float32)
    # Conv2d(C, C, 1, bias=False).weight[:, :, 0, 0]  -> (Cout, Cin)
    w_conv = jax.random.normal(kw, (C, C), jnp.float32) / jnp.sqrt(C)
    # BatchNorm2d(C) parameters / running stats (inference mode), deterministic.
    gamma = 1.0 + 0.1 * jax.random.normal(kg, (C,), jnp.float32)
    beta = 0.1 * jax.random.normal(kb, (C,), jnp.float32)
    mean = 0.1 * jax.random.normal(km, (C,), jnp.float32)
    var = 0.5 + jnp.abs(jax.random.normal(kv, (C,), jnp.float32))

    out = jax.block_until_ready(edge_enhancer(x, w_conv, gamma, beta, mean, var))
    ref = reference(x, w_conv, gamma, beta, mean, var)

    assert out.shape == x.shape and out.dtype == x.dtype
    max_err = float(jnp.max(jnp.abs(out - ref)))
    assert max_err < 1e-4, f"max_err={max_err}"
    print("KERNEL_OK")
</pallas_src>

<mosaic_0001>
module attributes {stable_mosaic.version = 11 : i64} {
  func.func @kernel(%arg0: i32, %arg1: memref<8x256xf32, #tpu.memory_space<vmem>>, %arg2: memref<4x256xf32, #tpu.memory_space<vmem>>, %arg3: memref<8x8xf32, #tpu.memory_space<vmem>>, %arg4: memref<8x1xf32, #tpu.memory_space<vmem>>, %arg5: memref<8x256xf32, #tpu.memory_space<vmem>>) attributes {dimension_semantics = [#tpu.dimension_semantics<parallel>], iteration_bounds = array<i64: 1>, scalar_prefetch = 0 : i64, scratch_operands = 0 : i64, tpu.core_type = #tpu.core_type<tc>, window_params = [{transform_indices = @transform_0, window_bounds = array<i64: 8, 256>}, {pipeline_mode = #tpu.pipeline_mode<synchronous>, transform_indices = @transform_1, window_bounds = array<i64: 4, 256>}, {pipeline_mode = #tpu.pipeline_mode<synchronous>, transform_indices = @transform_2, window_bounds = array<i64: 8, 8>}, {pipeline_mode = #tpu.pipeline_mode<synchronous>, transform_indices = @transform_3, window_bounds = array<i64: 8, 1>}, {transform_indices = @transform_4, window_bounds = array<i64: 8, 256>}]} {
    %c0 = arith.constant 0 : index
    %c0_0 = arith.constant 0 : index
    %0 = vector.load %arg1[%c0, %c0_0] : memref<8x256xf32, #tpu.memory_space<vmem>>, vector<8x256xf32>
    %c0_1 = arith.constant 0 : index
    %c0_2 = arith.constant 0 : index
    %1 = vector.load %arg2[%c0_1, %c0_2] : memref<4x256xf32, #tpu.memory_space<vmem>>, vector<1x256xf32>
    %c1 = arith.constant 1 : index
    %c0_3 = arith.constant 0 : index
    %2 = vector.load %arg2[%c1, %c0_3] : memref<4x256xf32, #tpu.memory_space<vmem>>, vector<1x256xf32>
    %c2 = arith.constant 2 : index
    %c0_4 = arith.constant 0 : index
    %3 = vector.load %arg2[%c2, %c0_4] : memref<4x256xf32, #tpu.memory_space<vmem>>, vector<1x256xf32>
    %c3 = arith.constant 3 : index
    %c0_5 = arith.constant 0 : index
    %4 = vector.load %arg2[%c3, %c0_5] : memref<4x256xf32, #tpu.memory_space<vmem>>, vector<1x256xf32>
    %c16_i32 = arith.constant 16 : i32
    %5 = tpu.dynamic_rotate %0 by %c16_i32 dim 1 : vector<8x256xf32>, i32 -> vector<8x256xf32>
    %6 = vector.broadcast %1 : vector<1x256xf32> to vector<8x256xf32>
    %7 = arith.mulf %5, %6 : vector<8x256xf32>
    %c240_i32 = arith.constant 240 : i32
    %8 = tpu.dynamic_rotate %0 by %c240_i32 dim 1 : vector<8x256xf32>, i32 -> vector<8x256xf32>
    %9 = vector.broadcast %2 : vector<1x256xf32> to vector<8x256xf32>
    %10 = arith.mulf %8, %9 : vector<8x256xf32>
    %11 = arith.addf %0, %7 : vector<8x256xf32>
    %12 = arith.addf %11, %10 : vector<8x256xf32>
    %c1_i32 = arith.constant 1 : i32
    %13 = tpu.dynamic_rotate %12 by %c1_i32 dim 1 : vector<8x256xf32>, i32 -> vector<8x256xf32>
    %14 = vector.broadcast %3 : vector<1x256xf32> to vector<8x256xf32>
    %15 = arith.mulf %13, %14 : vector<8x256xf32>
    %c255_i32 = arith.constant 255 : i32
    %16 = tpu.dynamic_rotate %12 by %c255_i32 dim 1 : vector<8x256xf32>, i32 -> vector<8x256xf32>
    %17 = vector.broadcast %4 : vector<1x256xf32> to vector<8x256xf32>
    %18 = arith.mulf %16, %17 : vector<8x256xf32>
    %19 = arith.addf %12, %15 : vector<8x256xf32>
    %20 = arith.addf %19, %18 : vector<8x256xf32>
    %cst = arith.constant 0.111111112 : f32
    %21 = vector.broadcast %cst : f32 to vector<8x256xf32>
    %22 = arith.mulf %20, %21 : vector<8x256xf32>
    %23 = arith.subf %0, %22 : vector<8x256xf32>
    %c0_6 = arith.constant 0 : index
    %c0_7 = arith.constant 0 : index
    %24 = vector.load %arg3[%c0_6, %c0_7] : memref<8x8xf32, #tpu.memory_space<vmem>>, vector<8x8xf32>
    %cst_8 = arith.constant dense<0.000000e+00> : vector<8x256xf32>
    %25 = tpu.matmul %24, %23, %cst_8 {dimension_numbers = #tpu.dot_dimension_numbers<[1], [0], [0], [1], [0, 0, 1, 1], [], []>} : vector<8x8xf32>, vector<8x256xf32>, vector<8x256xf32> -> vector<8x256xf32>
    %c0_9 = arith.constant 0 : index
    %c0_10 = arith.constant 0 : index
    %26 = vector.load %arg4[%c0_9, %c0_10] : memref<8x1xf32, #tpu.memory_space<vmem>>, vector<8x1xf32>
    %27 = vector.broadcast %26 : vector<8x1xf32> to vector<8x256xf32>
    %28 = arith.addf %25, %27 : vector<8x256xf32>
    %cst_11 = arith.constant 5.000000e-01 : f32
    %29 = vector.broadcast %cst_11 : f32 to vector<8x256xf32>
    %30 = arith.mulf %29, %28 : vector<8x256xf32>
    %31 = math.tanh %30 : vector<8x256xf32>
    %cst_12 = arith.constant 5.000000e-01 : f32
    %32 = vector.broadcast %cst_12 : f32 to vector<8x256xf32>
    %33 = arith.mulf %32, %31 : vector<8x256xf32>
    %cst_13 = arith.constant 5.000000e-01 : f32
    %34 = vector.broadcast %cst_13 : f32 to vector<8x256xf32>
    %35 = arith.addf %33, %34 : vector<8x256xf32>
    %36 = arith.addf %0, %35 : vector<8x256xf32>
    %c0_14 = arith.constant 0 : index
    %c0_15 = arith.constant 0 : index
    %37 = vector.load %arg5[%c0_14, %c0_15] : memref<8x256xf32, #tpu.memory_space<vmem>>, vector<8x256xf32>
    tpu.vector_store %arg5[%c0_14, %c0_15], %36 {strides = array<i32>} : memref<8x256xf32, #tpu.memory_space<vmem>>, vector<8x256xf32>,
    return
  }
  func.func @transform_0(%arg0: i32) -> (i32, i32) {
    %c0_i32 = arith.constant 0 : i32
    %c0_i32_0 = arith.constant 0 : i32
    return %arg0, %c0_i32 : i32, i32
  }
  func.func @transform_1(%arg0: i32) -> (i32, i32) {
    %c0_i32 = arith.constant 0 : i32
    %c0_i32_0 = arith.constant 0 : i32
    %c0_i32_1 = arith.constant 0 : i32
    return %c0_i32, %c0_i32_0 : i32, i32
  }
  func.func @transform_2(%arg0: i32) -> (i32, i32) {
    %c0_i32 = arith.constant 0 : i32
    %c0_i32_0 = arith.constant 0 : i32
    %c0_i32_1 = arith.constant 0 : i32
    return %c0_i32, %c0_i32_0 : i32, i32
  }
  func.func @transform_3(%arg0: i32) -> (i32, i32) {
    %c0_i32 = arith.constant 0 : i32
    %c0_i32_0 = arith.constant 0 : i32
    %c0_i32_1 = arith.constant 0 : i32
    return %c0_i32, %c0_i32_0 : i32, i32
  }
  func.func @transform_4(%arg0: i32) -> (i32, i32) {
    %c0_i32 = arith.constant 0 : i32
    %c0_i32_0 = arith.constant 0 : i32
    return %arg0, %c0_i32 : i32, i32
  }
}

</mosaic_0001>

<llo_original>
// kernel: tpu_custom_call.1
$region0: #{tpu_custom_call.1}
  #allocation0 [shape = 'u32[]', space=smem, size = 0x4, offset = 0x4, fixed_abs, tag = 'smem constant byte address 0x4 - core index']
  #allocation1 [shape = 'u32[144,128]{1,0:T(1,128)}', space=vmem, size = 0x12000, scoped, tag = 'internal scratch']
  %s0 = inlined_call_operand.hbm [shape: f32[8,256], index: 0, kind: input, shape index: {}]
  %s1 = inlined_call_operand.vmem [shape: f32[4,256], index: 1, kind: input, shape index: {}]
  %s2 = inlined_call_operand.hbm [shape: f32[8,8], index: 2, kind: input, shape index: {}]
  %s3 = inlined_call_operand.vmem [shape: f32[8,1], index: 3, kind: input, shape index: {}]
  %s4 = inlined_call_operand.hbm [shape: f32[8,256], index: 4, kind: output, shape index: {}]
  %s5 = sld [smem:[#allocation0]]
  $region34: #{tpu_custom_call.1} parent=0
    _
  %s7 = ssub.s32 1, %s5
  %s8 = scalar_select 0, %s7, %s5
  $region1: #{tpu_custom_call.1} parent=0
    #allocation2 [shape = 'u8[8192]{0}', space=vmem, size = 0x2000, scoped, tag = 'input window, operand 0, single buffered']
    #allocation3 [shape = 's32[1]{0}', space=sflag, size = 0x4, scoped, tag = 'scoped memory for tpu_custom_call.1']
    #allocation4 [shape = 's32[1]{0}', space=sflag, size = 0x4, scoped, tag = 'scoped memory for tpu_custom_call.1']
    #allocation5 [shape = 'u8[4096]{0}', space=vmem, size = 0x1000, scoped, tag = 'input window, operand 2, single buffered']
    #allocation6 [shape = 's32[1]{0}', space=sflag, size = 0x4, scoped, tag = 'scoped memory for tpu_custom_call.1']
    #allocation7 [shape = 'u8[8192]{0}', space=vmem, size = 0x2000, scoped, tag = 'output window, operand 0, single buffered']
    %9 = vsyncpa [#allocation3], 0
    %10 = vsyncpa [#allocation6], 0
    %11 = vsyncpa [#allocation4], 0
    // Predicated region
    $region2: #{tpu_custom_call.1} parent=1 // pred_check
      _
    $region3: #{tpu_custom_call.1} parent=1 // pred_check_branch
      %13 = sbr.rel (0) target = $region5
    $region4: #{tpu_custom_call.1} parent=1 // pred_region
      %s15 = ssub.s32 256, 256
      %16 = vsyncadd [#allocation3], %s15
      %s18 = sshll.u32 [#allocation2], 4
      %s19 = int_to_ptr.vmem [resolvable:$true] %s18
      %21 = dma.hbm_to_vmem [thread:$0]  %s0, 256, %s19, [#allocation3]
    $region5: #{tpu_custom_call.1} parent=1 // pred_fallthru
      _
    // Predicated region
    $region6: #{tpu_custom_call.1} parent=1 // pred_check
      _
    $region7: #{tpu_custom_call.1} parent=1 // pred_check_branch
      %23 = sbr.rel (0) target = $region9
    $region8: #{tpu_custom_call.1} parent=1 // pred_region
      _
    $region9: #{tpu_custom_call.1} parent=1 // pred_fallthru
      _
    // Predicated region
    $region10: #{tpu_custom_call.1} parent=1 // pred_check
      _
    $region11: #{tpu_custom_call.1} parent=1 // pred_check_branch
      %25 = sbr.rel (0) target = $region13
    $region12: #{tpu_custom_call.1} parent=1 // pred_region
      %s27 = ssub.s32 128, 128
      %28 = vsyncadd [#allocation6], %s27
      %s30 = sshll.u32 [#allocation5], 4
      %s31 = int_to_ptr.vmem [resolvable:$true] %s30
      %33 = dma.hbm_to_vmem [thread:$0]  %s2, 128, %s31, [#allocation6]
    $region13: #{tpu_custom_call.1} parent=1 // pred_fallthru
      _
    // Predicated region
    $region14: #{tpu_custom_call.1} parent=1 // pred_check
      _
    $region15: #{tpu_custom_call.1} parent=1 // pred_check_branch
      %35 = sbr.rel (0) target = $region17
    $region16: #{tpu_custom_call.1} parent=1 // pred_region
      _
    $region17: #{tpu_custom_call.1} parent=1 // pred_fallthru
      _
    // Predicated region
    $region18: #{tpu_custom_call.1} parent=1 // pred_check
      _
    $region19: #{tpu_custom_call.1} parent=1 // pred_check_branch
      %37 = sbr.rel (0) target = $region21
    $region20: #{tpu_custom_call.1} parent=1 // pred_region
      %38 = dma.done [#allocation3], 256
    $region21: #{tpu_custom_call.1} parent=1 // pred_fallthru
      _
    // Predicated region
    $region22: #{tpu_custom_call.1} parent=1 // pred_check
      _
    $region23: #{tpu_custom_call.1} parent=1 // pred_check_branch
      %40 = sbr.rel (0) target = $region25
    $region24: #{tpu_custom_call.1} parent=1 // pred_region
      %41 = dma.done [#allocation6], 128
    $region25: #{tpu_custom_call.1} parent=1 // pred_fallthru
      _
    %v42 = vld [vmem:[#allocation2] sm:$0xff]
    %v43 = vld [vmem:[#allocation2 + $0x8] sm:$0xff]
    %v44 = vld [vmem:[%s1] ss:$4 sm:$0x3]
    %s45 = scalar_lea.vmem %s1, 1
    %v46 = vld [vmem:[%s45] ss:$4 sm:$0x3]
    %s47 = scalar_lea.vmem %s1, 2
    %v48 = vld [vmem:[%s47] ss:$4 sm:$0x3]
    %s49 = scalar_lea.vmem %s1, 3
    %v50 = vld [vmem:[%s49] ss:$4 sm:$0x3]
    %51 = vrot.lane.b32.xlu0 %v42, 16
    %v52 = vpop.permute.xlu0 %51
    %53 = vrot.lane.b32.xlu0 %v43, 16
    %v54 = vpop.permute.xlu0 %53
    %v55 = vlaneseq
    %v56 = vand.u32 %v55, 127
    %vm57 = vcmp.lt.s32.totalorder %v56, 16
    %v58 = vsel %vm57, %v52, %v54
    %v59 = vsel %vm57, %v54, %v52
    %v61 = vlaneseq
    %v62 = vshrl.u32 %v61, 7
    %v63 = vsub.s32 0, %v62
    %v64 = vrot.slane %v44, %v63
    %v65 = vlaneseq
    %v66 = vshrl.u32 %v65, 7
    %v67 = vsub.s32 1, %v66
    %v68 = vrot.slane %v44, %v67
    %v71 = vmul.f32 %v59, %v64
    %v72 = vmul.f32 %v58, %v68
    %73 = vrot.lane.b32.xlu0 %v42, 112
    %v74 = vpop.permute.xlu0 %73
    %75 = vrot.lane.b32.xlu0 %v43, 112
    %v76 = vpop.permute.xlu0 %75
    %vm77 = vcmp.lt.s32.totalorder %v56, 112
    %v78 = vsel %vm77, %v74, %v76
    %v79 = vsel %vm77, %v76, %v74
    %v81 = vlaneseq
    %v82 = vshrl.u32 %v81, 7
    %v83 = vsub.s32 0, %v82
    %v84 = vrot.slane %v46, %v83
    %v85 = vlaneseq
    %v86 = vshrl.u32 %v85, 7
    %v87 = vsub.s32 1, %v86
    %v88 = vrot.slane %v46, %v87
    %v91 = vmul.f32 %v78, %v84
    %v92 = vmul.f32 %v79, %v88
    %v93 = vadd.f32 %v42, %v71
    %v94 = vadd.f32 %v43, %v72
    %v95 = vadd.f32 %v93, %v91
    %v96 = vadd.f32 %v94, %v92
    %97 = vrot.lane.b32.xlu0 %v95, 1
    %v98 = vpop.permute.xlu0 %97
    %99 = vrot.lane.b32.xlu0 %v96, 1
    %v100 = vpop.permute.xlu0 %99
    %vm101 = vcmp.lt.s32.totalorder %v56, 1
    %v102 = vsel %vm101, %v98, %v100
    %v103 = vsel %vm101, %v100, %v98
    %v105 = vlaneseq
    %v106 = vshrl.u32 %v105, 7
    %v107 = vsub.s32 0, %v106
    %v108 = vrot.slane %v48, %v107
    %v109 = vlaneseq
    %v110 = vshrl.u32 %v109, 7
    %v111 = vsub.s32 1, %v110
    %v112 = vrot.slane %v48, %v111
    %v115 = vmul.f32 %v103, %v108
    %v116 = vmul.f32 %v102, %v112
    %117 = vrot.lane.b32.xlu0 %v95, 127
    %v118 = vpop.permute.xlu0 %117
    %119 = vrot.lane.b32.xlu0 %v96, 127
    %v120 = vpop.permute.xlu0 %119
    %vm121 = vcmp.lt.s32.totalorder %v56, 127
    %v122 = vsel %vm121, %v118, %v120
    %v123 = vsel %vm121, %v120, %v118
    %v125 = vlaneseq
    %v126 = vshrl.u32 %v125, 7
    %v127 = vsub.s32 0, %v126
    %v128 = vrot.slane %v50, %v127
    %v129 = vlaneseq
    %v130 = vshrl.u32 %v129, 7
    %v131 = vsub.s32 1, %v130
    %v132 = vrot.slane %v50, %v131
    %v135 = vmul.f32 %v122, %v128
    %v136 = vmul.f32 %v123, %v132
    %v137 = vadd.f32 %v95, %v115
    %v138 = vadd.f32 %v96, %v116
    %v139 = vadd.f32 %v137, %v135
    %v140 = vadd.f32 %v138, %v136
    %v141 = vmul.f32 %v139, 0.11111111
    %v142 = vmul.f32 %v140, 0.11111111
    %v143 = vsub.f32 %v42, %v141
    %v144 = vsub.f32 %v43, %v142
    %v145 = vld [vmem:[#allocation5] sm:$0xff]
    %v146 = vld [vmem:[%s3] sm:$0xff]
    %148 = vset.pattern.permute.xlu0 0
    %149 = vperm.xlu0 %148, %v146
    %v150 = vpop.permute.xlu0 %149
    %vm152 = vcmask 64512
    %v154 = vsel %vm152, %v145, 0
    %156 = vmatprep.subr.mxu0 0.0
    %157 = vmatpush1.msra.mxu0 0.0
    %158 = vmatprep.subr.mxu0 0.0
    %159 = vmatpush1.msra.mxu0 0.0
    %160 = vmatprep.subr.mxu0 0.0
    %161 = vmatpush1.msra.mxu0 0.0
    %162 = vmatprep.subr.mxu0 0.0
    %163 = vmatpush1.msra.mxu0 0.0
    %164 = vmatprep.subr.mxu0 0.0
    %165 = vmatpush1.msra.mxu0 0.0
    %166 = vmatprep.subr.mxu0 0.0
    %167 = vmatpush1.msra.mxu0 0.0
    %168 = vmatprep.subr.mxu0 0.0
    %169 = vmatpush1.msra.mxu0 0.0
    %170 = vmatprep.subr.mxu0 0.0
    %171 = vmatpush1.msra.mxu0 0.0
    %172 = vmatprep.subr.mxu0 0.0
    %173 = vmatpush1.msra.mxu0 0.0
    %174 = vmatprep.subr.mxu0 0.0
    %175 = vmatpush1.msra.mxu0 0.0
    %176 = vmatprep.subr.mxu0 0.0
    %177 = vmatpush1.msra.mxu0 0.0
    %178 = vmatprep.subr.mxu0 0.0
    %179 = vmatpush1.msra.mxu0 0.0
    %180 = vmatprep.subr.mxu0 0.0
    %181 = vmatpush1.msra.mxu0 0.0
    %182 = vmatprep.subr.mxu0 0.0
    %183 = vmatpush1.msra.mxu0 0.0
    %184 = vmatprep.subr.mxu0 0.0
    %185 = vmatpush1.msra.mxu0 0.0
    %186 = vmatprep.subr.mxu0 %v144
    %187 = vmatpush1.msra.mxu0 %v143
    %188 = vmatprep.subr.mxu0 0.0
    %189 = vmatpush2.msra.mxu0 0.0
    %190 = vmatprep.subr.mxu0 0.0
    %191 = vmatpush2.msra.mxu0 0.0
    %192 = vmatprep.subr.mxu0 0.0
    %193 = vmatpush2.msra.mxu0 0.0
    %194 = vmatprep.subr.mxu0 0.0
    %195 = vmatpush2.msra.mxu0 0.0
    %196 = vmatprep.subr.mxu0 0.0
    %197 = vmatpush2.msra.mxu0 0.0
    %198 = vmatprep.subr.mxu0 0.0
    %199 = vmatpush2.msra.mxu0 0.0
    %200 = vmatprep.subr.mxu0 0.0
    %201 = vmatpush2.msra.mxu0 0.0
    %202 = vmatprep.subr.mxu0 0.0
    %203 = vmatpush2.msra.mxu0 0.0
    %204 = vmatprep.subr.mxu0 0.0
    %205 = vmatpush2.msra.mxu0 0.0
    %206 = vmatprep.subr.mxu0 0.0
    %207 = vmatpush2.msra.mxu0 0.0
    %208 = vmatprep.subr.mxu0 0.0
    %209 = vmatpush2.msra.mxu0 0.0
    %210 = vmatprep.subr.mxu0 0.0
    %211 = vmatpush2.msra.mxu0 0.0
    %212 = vmatprep.subr.mxu0 0.0
    %213 = vmatpush2.msra.mxu0 0.0
    %214 = vmatprep.subr.mxu0 0.0
    %215 = vmatpush2.msra.mxu0 0.0
    %216 = vmatprep.subr.mxu0 0.0
    %217 = vmatpush2.msra.mxu0 0.0
    %218 = vmatprep.subr.mxu0 0.0
    %219 = vmatpush2.msra.mxu0 0.0
    %220 = vmatprep.mubr.f32.mxu0 0.0
    %221 = vmatmul.mubr.f32.gmra.mxu0 %v154
    %v222 = vpop.f32.mrf.mxu0
    %v223 = vadd.f32 %v150, %v222
    %v224 = vpop.f32.mrf.mxu0
    %v225 = vadd.f32 %v150, %v224
    %226 = vdwg.mxu0
    %v227 = vmul.f32 %v223, 0.5
    %v228 = vmul.f32 %v225, 0.5
    %v229 = vtanh.pop %v227
    %v230 = vtanh.pop %v228
    %v231 = vmul.f32 %v229, 0.5
    %v232 = vmul.f32 %v230, 0.5
    %v233 = vadd.f32 %v231, 0.5
    %v234 = vadd.f32 %v232, 0.5
    %v235 = vadd.f32 %v42, %v233
    %v236 = vadd.f32 %v43, %v234
    %237 = vst [vmem:[#allocation7] sm:$0xff] %v235
    %238 = vst [vmem:[#allocation7 + $0x8] sm:$0xff] %v236
    // Predicated region
    $region26: #{tpu_custom_call.1} parent=1 // pred_check
      _
    $region27: #{tpu_custom_call.1} parent=1 // pred_check_branch
      %240 = sbr.rel (0) target = $region29
    $region28: #{tpu_custom_call.1} parent=1 // pred_region
      %s242 = ssub.s32 256, 256
      %243 = vsyncadd [#allocation4], %s242
      %s245 = sshll.u32 [#allocation7], 4
      %s246 = int_to_ptr.vmem [resolvable:$true] %s245
      %248 = dma.vmem_to_hbm [thread:$0]  %s246, 256, %s4, [#allocation4]
    $region29: #{tpu_custom_call.1} parent=1 // pred_fallthru
      _
    // Predicated region
    $region30: #{tpu_custom_call.1} parent=1 // pred_check
      _
    $region31: #{tpu_custom_call.1} parent=1 // pred_check_branch
      %250 = sbr.rel (0) target = $region33
    $region32: #{tpu_custom_call.1} parent=1 // pred_region
      %251 = dma.done [#allocation4], 256
    $region33: #{tpu_custom_call.1} parent=1 // pred_fallthru
      _
    %252 = vsyncpa [#allocation3], 1
    %253 = vsyncpa [#allocation6], 1
    %254 = vsyncpa [#allocation4], 1

</llo_original>
